<compile_context>
chip_gen: v7x
topology: tpu7x:2x2x1
jax: 0.10.0
libtpu: 0.0.40
codegen_flags: <defaults>
</compile_context>

<pallas_src>
import math

import jax
import jax.numpy as jnp
from jax.experimental import pallas as pl
from jax.experimental.pallas import tpu as pltpu


def _round_up(x, m):
    return (x + m - 1) // m * m


def _stats_net_kernel(ns_ref, act_ref, w1s_ref, w1a_ref, b1_ref,
                      w2_ref, b2_ref, w3t_ref, b3t_ref, ot_ref):
    """Fused MLP (Linear -> ReLU -> Linear -> ReLU -> Linear).

    layer1 folds the one-hot(action) contribution in via a tiny in-VMEM
    matmul (no HBM concat).  All matmuls run bf16 on the MXU with f32
    accumulation; bias add and ReLU stay in f32 on the VPU.  The last layer
    is contracted as (out, H) x (TB, H)^T so the result is already in the
    lane-dense transposed (out, TB) layout used for the HBM writeback.

    NOTE: out-of-range / negative action indices silently yield an all-zero
    one-hot row (documented assumption; F.one_hot in PyTorch would raise).
    """
    tb = ns_ref.shape[0]
    a = w1a_ref.shape[0]

    ns = ns_ref[...].astype(w1s_ref.dtype)              # f32 -> bf16 on VPU
    act = act_ref[...]                                   # (TB, 1) int32
    onehot = (jax.lax.broadcasted_iota(jnp.int32, (tb, a), 1) == act
              ).astype(ns.dtype)                         # (TB, A) bf16

    x = (jnp.dot(ns, w1s_ref[...], preferred_element_type=jnp.float32)
         + jnp.dot(onehot, w1a_ref[...], preferred_element_type=jnp.float32)
         + b1_ref[...])
    x = jnp.maximum(x, 0.0)

    x = jnp.dot(x.astype(w2_ref.dtype), w2_ref[...],
                preferred_element_type=jnp.float32) + b2_ref[...]
    x = jnp.maximum(x, 0.0)

    # Final layer, directly transposed: (out_sub, H) . (TB, H)^T -> (out_sub, TB)
    ot = jax.lax.dot_general(
        w3t_ref[...], x.astype(w3t_ref.dtype),
        dimension_numbers=(((1,), (1,)), ((), ())),
        preferred_element_type=jnp.float32) + b3t_ref[...]
    ot_ref[...] = ot.astype(ot_ref.dtype)


def statistics_network_forward(next_state, action, params, action_space,
                               output_dim, *, block_batch=2048):
    """Forward pass matching StatisticsNetwork.forward.

    next_state: [bs, state_space] float32
    action:     [bs] int (one action index per batch element; assumes
                0 <= action < action_space, same as the reference module)
    """
    bs, state_space = next_state.shape
    w1s, w1a, b1, w2, b2, w3t, b3t = params
    hidden = w1s.shape[1]
    out_sub = w3t.shape[0]          # output_dim rounded up to a multiple of 8

    # >= 2 grid steps and an even count so ("parallel",) balances both TCs on
    # v7x; tb is the *lane* dim of the output block -> multiple of 128.
    num_tiles = max(2, pl.cdiv(bs, block_batch))
    num_tiles += num_tiles % 2
    tb = _round_up(pl.cdiv(bs, num_tiles), 128)
    bs_pad = tb * num_tiles

    ns = next_state.astype(jnp.float32)      # stays f32; cast to bf16 in-kernel
    act = action.astype(jnp.int32).reshape(bs, 1)
    if bs_pad != bs:
        ns = jnp.pad(ns, ((0, bs_pad - bs), (0, 0)))
        act = jnp.pad(act, ((0, bs_pad - bs), (0, 0)))

    grid = (num_tiles,)
    row_spec = lambda shape: pl.BlockSpec(shape, lambda i: (i, 0))
    resident = lambda shape: pl.BlockSpec(shape, lambda i: (0, 0))

    flops = 2 * bs_pad * (state_space * hidden + action_space * hidden
                          + hidden * hidden + hidden * out_sub)
    bytes_accessed = (
        bs_pad * state_space * 4                       # next_state (f32)
        + bs_pad * 4                                   # action (int32)
        + (state_space * hidden + action_space * hidden
           + hidden * hidden + out_sub * hidden) * 2   # bf16 weights
        + (2 * hidden + out_sub) * 4                   # f32 biases
        + bs_pad * out_sub * 4)                        # f32 transposed output

    out_t = pl.pallas_call(
        _stats_net_kernel,
        out_shape=jax.ShapeDtypeStruct((out_sub, bs_pad), jnp.float32),
        grid=grid,
        in_specs=[
            row_spec((tb, state_space)),        # next_state tile (f32)
            row_spec((tb, 1)),                  # action tile (int32)
            resident((state_space, hidden)),    # w1_state
            resident((action_space, hidden)),   # w1_action
            resident((1, hidden)),              # b1
            resident((hidden, hidden)),         # w2
            resident((1, hidden)),              # b2
            resident((out_sub, hidden)),        # w3 transposed (sublane-padded)
            resident((out_sub, 1)),             # b3 transposed
        ],
        out_specs=pl.BlockSpec((out_sub, tb), lambda i: (0, i)),  # lane-dense
        compiler_params=pltpu.CompilerParams(
            dimension_semantics=("parallel",),        # megacore on v7x
            vmem_limit_bytes=32 * 1024 * 1024),
        cost_estimate=pl.CostEstimate(
            flops=flops, transcendentals=0, bytes_accessed=bytes_accessed),
    )(ns, act, w1s, w1a, b1, w2, b2, w3t, b3t)

    # Tiny (out, bs) slab -> user-facing (bs, output_dim).
    return out_t[:output_dim, :bs].T


def init_params(key, state_space, action_space, hidden, output_dim):
    """Init matching the PyTorch module: xavier_uniform_ weights, default
    U(-1/sqrt(fan_in), 1/sqrt(fan_in)) biases.  Weights stored [in, out]
    (transposed vs PyTorch), layer1 split into state/action parts, the output
    layer stored pre-transposed as (out_sub, hidden) with out_sub padded to a
    multiple of 8, matmul weights cast to bf16.
    """
    in_dim = state_space + action_space
    out_sub = _round_up(output_dim, 8)

    def xavier(key, fan_in, fan_out):
        bound = math.sqrt(6.0 / (fan_in + fan_out))
        return jax.random.uniform(key, (fan_in, fan_out), jnp.float32,
                                  -bound, bound)

    def bias(key, fan_in, fan_out):
        bound = 1.0 / math.sqrt(fan_in)
        return jax.random.uniform(key, (1, fan_out), jnp.float32,
                                  -bound, bound)

    ks = jax.random.split(key, 6)
    w1 = xavier(ks[0], in_dim, hidden)              # same dist as concat layout
    w1s = w1[:state_space].astype(jnp.bfloat16)
    w1a = w1[state_space:].astype(jnp.bfloat16)
    b1 = bias(ks[1], in_dim, hidden)

    w2 = xavier(ks[2], hidden, hidden).astype(jnp.bfloat16)
    b2 = bias(ks[3], hidden, hidden)

    w3 = xavier(ks[4], hidden, output_dim)          # (hidden, output_dim)
    b3 = bias(ks[5], hidden, output_dim)            # (1, output_dim)
    w3t = jnp.pad(w3.T, ((0, out_sub - output_dim), (0, 0))
                  ).astype(jnp.bfloat16)            # (out_sub, hidden)
    b3t = jnp.pad(b3.T, ((0, out_sub - output_dim), (0, 0)))  # (out_sub, 1)

    return (w1s, w1a, b1, w2, b2, w3t, b3t)


def _reference_forward(next_state, action, params, action_space, output_dim):
    """Pure-JAX reference (same bf16/f32-accum math) for correctness check."""
    w1s, w1a, b1, w2, b2, w3t, b3t = params
    ns = next_state.astype(jnp.bfloat16)
    onehot = (jnp.arange(action_space)[None, :] == action[:, None]
              ).astype(jnp.bfloat16)
    x = (jnp.dot(ns, w1s, preferred_element_type=jnp.float32)
         + jnp.dot(onehot, w1a, preferred_element_type=jnp.float32) + b1)
    x = jnp.maximum(x, 0.0)
    x = jnp.dot(x.astype(jnp.bfloat16), w2,
                preferred_element_type=jnp.float32) + b2
    x = jnp.maximum(x, 0.0)
    o = jnp.dot(x.astype(jnp.bfloat16), w3t.T,
                preferred_element_type=jnp.float32) + b3t.T
    return o[:, :output_dim]


if __name__ == "__main__":
    # Small demo shapes consistent with the module's forward.
    batch = 64
    state_space = 16
    action_space = 4
    hidden = 128        # lane-aligned hidden (full 128-lane vreg / MXU tile)
    output_dim = 8      # kernel writes a transposed (8, bs_pad) lane-dense slab

    key = jax.random.PRNGKey(0)
    k_param, k_state, k_act = jax.random.split(key, 3)

    params = init_params(k_param, state_space, action_space, hidden,
                         output_dim)
    next_state = jax.random.normal(k_state, (batch, state_space), jnp.float32)
    action = jax.random.randint(k_act, (batch,), 0, action_space, jnp.int32)

    # Default block_batch still yields grid=(2,) (min-2 even grid for v7x),
    # so the batch pipeline / megacore path is exercised even at batch=64.
    out = statistics_network_forward(next_state, action, params, action_space,
                                     output_dim)
    out = jax.block_until_ready(out)

    ref = _reference_forward(next_state, action, params, action_space,
                             output_dim)
    assert out.shape == (batch, output_dim)
    assert jnp.allclose(out, ref, atol=2e-2, rtol=2e-2), (
        float(jnp.max(jnp.abs(out - ref))))

    print("KERNEL_OK")
</pallas_src>

<mosaic_0001>
module attributes {stable_mosaic.version = 11 : i64} {
  func.func @_stats_net_kernel(%arg0: i32, %arg1: memref<128x16xf32, #tpu.memory_space<vmem>>, %arg2: memref<128x1xi32, #tpu.memory_space<vmem>>, %arg3: memref<16x128xbf16, #tpu.memory_space<vmem>>, %arg4: memref<4x128xbf16, #tpu.memory_space<vmem>>, %arg5: memref<1x128xf32, #tpu.memory_space<vmem>>, %arg6: memref<128x128xbf16, #tpu.memory_space<vmem>>, %arg7: memref<1x128xf32, #tpu.memory_space<vmem>>, %arg8: memref<8x128xbf16, #tpu.memory_space<vmem>>, %arg9: memref<8x1xf32, #tpu.memory_space<vmem>>, %arg10: memref<8x128xf32, #tpu.memory_space<vmem>>) attributes {dimension_semantics = [#tpu.dimension_semantics<parallel>], iteration_bounds = array<i64: 2>, scalar_prefetch = 0 : i64, scratch_operands = 0 : i64, tpu.core_type = #tpu.core_type<tc>, window_params = [{transform_indices = @transform_0, window_bounds = array<i64: 128, 16>}, {transform_indices = @transform_1, window_bounds = array<i64: 128, 1>}, {pipeline_mode = #tpu.pipeline_mode<synchronous>, transform_indices = @transform_2, window_bounds = array<i64: 16, 128>}, {pipeline_mode = #tpu.pipeline_mode<synchronous>, transform_indices = @transform_3, window_bounds = array<i64: 4, 128>}, {pipeline_mode = #tpu.pipeline_mode<synchronous>, transform_indices = @transform_4, window_bounds = array<i64: 1, 128>}, {pipeline_mode = #tpu.pipeline_mode<synchronous>, transform_indices = @transform_5, window_bounds = array<i64: 128, 128>}, {pipeline_mode = #tpu.pipeline_mode<synchronous>, transform_indices = @transform_6, window_bounds = array<i64: 1, 128>}, {pipeline_mode = #tpu.pipeline_mode<synchronous>, transform_indices = @transform_7, window_bounds = array<i64: 8, 128>}, {pipeline_mode = #tpu.pipeline_mode<synchronous>, transform_indices = @transform_8, window_bounds = array<i64: 8, 1>}, {transform_indices = @transform_9, window_bounds = array<i64: 8, 128>}]} {
    %c0 = arith.constant 0 : index
    %c0_0 = arith.constant 0 : index
    %0 = vector.load %arg1[%c0, %c0_0] : memref<128x16xf32, #tpu.memory_space<vmem>>, vector<128x16xf32>
    %1 = arith.truncf %0 : vector<128x16xf32> to vector<128x16xbf16>
    %c0_1 = arith.constant 0 : index
    %c0_2 = arith.constant 0 : index
    %2 = vector.load %arg2[%c0_1, %c0_2] : memref<128x1xi32, #tpu.memory_space<vmem>>, vector<128x1xi32>
    %3 = tpu.iota {dimensions = array<i32: 1>} : vector<128x4xi32>
    %4 = vector.broadcast %2 : vector<128x1xi32> to vector<128x4xi32>
    %5 = arith.cmpi eq, %3, %4 : vector<128x4xi32>
    %6 = arith.extui %5 : vector<128x4xi1> to vector<128x4xi32>
    %7 = arith.sitofp %6 : vector<128x4xi32> to vector<128x4xf32>
    %8 = arith.truncf %7 : vector<128x4xf32> to vector<128x4xbf16>
    %c0_3 = arith.constant 0 : index
    %c0_4 = arith.constant 0 : index
    %9 = vector.load %arg3[%c0_3, %c0_4] : memref<16x128xbf16, #tpu.memory_space<vmem>>, vector<16x128xbf16>
    %cst = arith.constant dense<0.000000e+00> : vector<128x128xf32>
    %10 = tpu.matmul %1, %9, %cst {dimension_numbers = #tpu.dot_dimension_numbers<[1], [0], [0], [1], [0, 0, 1, 1], [], []>} : vector<128x16xbf16>, vector<16x128xbf16>, vector<128x128xf32> -> vector<128x128xf32>
    %c0_5 = arith.constant 0 : index
    %c0_6 = arith.constant 0 : index
    %11 = vector.load %arg4[%c0_5, %c0_6] : memref<4x128xbf16, #tpu.memory_space<vmem>>, vector<4x128xbf16>
    %cst_7 = arith.constant dense<0.000000e+00> : vector<128x128xf32>
    %12 = tpu.matmul %8, %11, %cst_7 {dimension_numbers = #tpu.dot_dimension_numbers<[1], [0], [0], [1], [0, 0, 1, 1], [], []>} : vector<128x4xbf16>, vector<4x128xbf16>, vector<128x128xf32> -> vector<128x128xf32>
    %13 = arith.addf %10, %12 : vector<128x128xf32>
    %c0_8 = arith.constant 0 : index
    %c0_9 = arith.constant 0 : index
    %14 = vector.load %arg5[%c0_8, %c0_9] : memref<1x128xf32, #tpu.memory_space<vmem>>, vector<1x128xf32>
    %15 = vector.broadcast %14 : vector<1x128xf32> to vector<128x128xf32>
    %16 = arith.addf %13, %15 : vector<128x128xf32>
    %cst_10 = arith.constant 0.000000e+00 : f32
    %17 = vector.broadcast %cst_10 : f32 to vector<128x128xf32>
    %18 = arith.maximumf %16, %17 : vector<128x128xf32>
    %19 = arith.truncf %18 : vector<128x128xf32> to vector<128x128xbf16>
    %c0_11 = arith.constant 0 : index
    %c0_12 = arith.constant 0 : index
    %20 = vector.load %arg6[%c0_11, %c0_12] : memref<128x128xbf16, #tpu.memory_space<vmem>>, vector<128x128xbf16>
    %cst_13 = arith.constant dense<0.000000e+00> : vector<128x128xf32>
    %21 = tpu.matmul %19, %20, %cst_13 {dimension_numbers = #tpu.dot_dimension_numbers<[1], [0], [0], [1], [0, 0, 1, 1], [], []>} : vector<128x128xbf16>, vector<128x128xbf16>, vector<128x128xf32> -> vector<128x128xf32>
    %c0_14 = arith.constant 0 : index
    %c0_15 = arith.constant 0 : index
    %22 = vector.load %arg7[%c0_14, %c0_15] : memref<1x128xf32, #tpu.memory_space<vmem>>, vector<1x128xf32>
    %23 = vector.broadcast %22 : vector<1x128xf32> to vector<128x128xf32>
    %24 = arith.addf %21, %23 : vector<128x128xf32>
    %cst_16 = arith.constant 0.000000e+00 : f32
    %25 = vector.broadcast %cst_16 : f32 to vector<128x128xf32>
    %26 = arith.maximumf %24, %25 : vector<128x128xf32>
    %c0_17 = arith.constant 0 : index
    %c0_18 = arith.constant 0 : index
    %27 = vector.load %arg8[%c0_17, %c0_18] : memref<8x128xbf16, #tpu.memory_space<vmem>>, vector<8x128xbf16>
    %28 = arith.truncf %26 : vector<128x128xf32> to vector<128x128xbf16>
    %cst_19 = arith.constant dense<0.000000e+00> : vector<8x128xf32>
    %29 = tpu.matmul %27, %28, %cst_19 {dimension_numbers = #tpu.dot_dimension_numbers<[1], [1], [0], [0], [0, 0, 1, 0], [], []>} : vector<8x128xbf16>, vector<128x128xbf16>, vector<8x128xf32> -> vector<8x128xf32>
    %c0_20 = arith.constant 0 : index
    %c0_21 = arith.constant 0 : index
    %30 = vector.load %arg9[%c0_20, %c0_21] : memref<8x1xf32, #tpu.memory_space<vmem>>, vector<8x1xf32>
    %31 = vector.broadcast %30 : vector<8x1xf32> to vector<8x128xf32>
    %32 = arith.addf %29, %31 : vector<8x128xf32>
    %c0_22 = arith.constant 0 : index
    %c0_23 = arith.constant 0 : index
    %33 = vector.load %arg10[%c0_22, %c0_23] : memref<8x128xf32, #tpu.memory_space<vmem>>, vector<8x128xf32>
    tpu.vector_store %arg10[%c0_22, %c0_23], %32 {strides = array<i32>} : memref<8x128xf32, #tpu.memory_space<vmem>>, vector<8x128xf32>,
    return
  }
  func.func @transform_0(%arg0: i32) -> (i32, i32) {
    %c0_i32 = arith.constant 0 : i32
    %c0_i32_0 = arith.constant 0 : i32
    return %arg0, %c0_i32 : i32, i32
  }
  func.func @transform_1(%arg0: i32) -> (i32, i32) {
    %c0_i32 = arith.constant 0 : i32
    %c0_i32_0 = arith.constant 0 : i32
    return %arg0, %c0_i32 : i32, i32
  }
  func.func @transform_2(%arg0: i32) -> (i32, i32) {
    %c0_i32 = arith.constant 0 : i32
    %c0_i32_0 = arith.constant 0 : i32
    %c0_i32_1 = arith.constant 0 : i32
    return %c0_i32, %c0_i32_0 : i32, i32
  }
  func.func @transform_3(%arg0: i32) -> (i32, i32) {
    %c0_i32 = arith.constant 0 : i32
    %c0_i32_0 = arith.constant 0 : i32
    %c0_i32_1 = arith.constant 0 : i32
    return %c0_i32, %c0_i32_0 : i32, i32
  }
  func.func @transform_4(%arg0: i32) -> (i32, i32) {
    %c0_i32 = arith.constant 0 : i32
    %c0_i32_0 = arith.constant 0 : i32
    %c0_i32_1 = arith.constant 0 : i32
    return %c0_i32, %c0_i32_0 : i32, i32
  }
  func.func @transform_5(%arg0: i32) -> (i32, i32) {
    %c0_i32 = arith.constant 0 : i32
    %c0_i32_0 = arith.constant 0 : i32
    %c0_i32_1 = arith.constant 0 : i32
    return %c0_i32, %c0_i32_0 : i32, i32
  }
  func.func @transform_6(%arg0: i32) -> (i32, i32) {
    %c0_i32 = arith.constant 0 : i32
    %c0_i32_0 = arith.constant 0 : i32
    %c0_i32_1 = arith.constant 0 : i32
    return %c0_i32, %c0_i32_0 : i32, i32
  }
  func.func @transform_7(%arg0: i32) -> (i32, i32) {
    %c0_i32 = arith.constant 0 : i32
    %c0_i32_0 = arith.constant 0 : i32
    %c0_i32_1 = arith.constant 0 : i32
    return %c0_i32, %c0_i32_0 : i32, i32
  }
  func.func @transform_8(%arg0: i32) -> (i32, i32) {
    %c0_i32 = arith.constant 0 : i32
    %c0_i32_0 = arith.constant 0 : i32
    %c0_i32_1 = arith.constant 0 : i32
    return %c0_i32, %c0_i32_0 : i32, i32
  }
  func.func @transform_9(%arg0: i32) -> (i32, i32) {
    %c0_i32 = arith.constant 0 : i32
    %c0_i32_0 = arith.constant 0 : i32
    return %c0_i32, %arg0 : i32, i32
  }
}

</mosaic_0001>

<llo_original>
// kernel: tpu_custom_call.1
$region0: #{tpu_custom_call.1}
  #allocation0 [shape = 'u32[]', space=smem, size = 0x4, offset = 0x4, fixed_abs, tag = 'smem constant byte address 0x4 - core index']
  #allocation1 [shape = 'u32[144,128]{1,0:T(1,128)}', space=vmem, size = 0x12000, scoped, tag = 'internal scratch']
  %s0 = inlined_call_operand.vmem [shape: f32[256,16], index: 0, kind: input, shape index: {}]
  %s1 = inlined_call_operand.vmem [shape: s32[256,1], index: 1, kind: input, shape index: {}]
  %s2 = inlined_call_operand.vmem [shape: bf16[16,128], index: 2, kind: input, shape index: {}]
  %s3 = inlined_call_operand.vmem [shape: bf16[4,128], index: 3, kind: input, shape index: {}]
  %s4 = inlined_call_operand.vmem [shape: f32[1,128], index: 4, kind: input, shape index: {}]
  %s5 = inlined_call_operand.vmem [shape: bf16[128,128], index: 5, kind: input, shape index: {}]
  %s6 = inlined_call_operand.vmem [shape: f32[1,128], index: 6, kind: input, shape index: {}]
  %s7 = inlined_call_operand.vmem [shape: bf16[8,128], index: 7, kind: input, shape index: {}]
  %s8 = inlined_call_operand.vmem [shape: f32[8,1], index: 8, kind: input, shape index: {}]
  %s9 = inlined_call_operand.hbm [shape: f32[8,256], index: 9, kind: output, shape index: {}]
  %s10 = sld [smem:[#allocation0]]
  $region69: #{tpu_custom_call.1} parent=0
    _
  %s12 = ssub.s32 1, %s10
  %s13 = scalar_select 0, %s12, %s10
  $region1: #{tpu_custom_call.1} parent=0
    #allocation2 [shape = 'u8[8192]{0}', space=vmem, size = 0x2000, scoped, tag = 'output window, operand 0']
    #allocation3 [shape = 's32[2]{0}', space=sflag, size = 0x8, scoped, tag = 'scoped memory for tpu_custom_call.1']
    %14 = vsyncpa [#allocation3], 0
    %s15 = scalar_lea.sflag [#allocation3], 1
    %16 = vsyncpa %s15, 0
    loop: start=0, step=1, limit=4
    $region2: #{tpu_custom_call.1} parent=1 // loop_pre_header
      _
    $region3: #{tpu_custom_call.1} parent=1 // loop_header
      %s18 = sphi 0, %s22
      %p19 = scmp.ge.s32.totalorder %s18, 4
      %s28 = sphi 0, %s30
      %s31 = sphi 0, %s28
      %s32 = sphi 0, %s31
      %s48 = sphi 0, %s32
      %s54 = sphi 0, %s56
      %s57 = sphi 0, %s54
      %s58 = sphi 0, %s57
      %s74 = sphi 0, %s58
      %s78 = sphi 0, %s78
      %s80 = sphi 0, %s78
      %s81 = sphi 0, %s80
      %s95 = sphi 0, %s81
      %s99 = sphi 0, %s99
      %s101 = sphi 0, %s99
      %s102 = sphi 0, %s101
      %s116 = sphi 0, %s102
      %s120 = sphi 0, %s120
      %s122 = sphi 0, %s120
      %s123 = sphi 0, %s122
      %s137 = sphi 0, %s123
      %s141 = sphi 0, %s141
      %s143 = sphi 0, %s141
      %s144 = sphi 0, %s143
      %s158 = sphi 0, %s144
      %s162 = sphi 0, %s162
      %s164 = sphi 0, %s162
      %s165 = sphi 0, %s164
      %s179 = sphi 0, %s165
      %s183 = sphi 0, %s183
      %s185 = sphi 0, %s183
      %s186 = sphi 0, %s185
      %s200 = sphi 0, %s186
      %s204 = sphi 0, %s204
      %s206 = sphi 0, %s204
      %s207 = sphi 0, %s206
      %s221 = sphi 0, %s207
      %s227 = sphi 0, %s229
      %s230 = sphi 0, %s227
      %s231 = sphi 0, %s230
      %s247 = sphi 0, %s231
    $region4: #{tpu_custom_call.1} parent=1 // loop_header_branch
      %21 = sbr.rel (%p19) target = $region8
    $region5: #{tpu_custom_call.1} parent=1 // loop_body
      %s23 = ssub.s32 %s18, 1
      %s24 = ssub.s32 %s18, 2
      %s25 = sadd.s32 %s18, 1
      %s26 = ssub.s32 %s18, %s25
      %p27 = scmp.eq.s32.totalorder %s26, 0
      %s29 = sadd.s32 %s28, 1
      %s30 = scalar_select %p27, %s28, %s29
      %p33 = pneg %p27
      %p34 = scmp.eq.s32.totalorder %s18, 1
      %p35 = por %p33, %p34
      %p36 = scmp.ne.s32.totalorder %s28, %s31
      %p37 = scmp.eq.s32.totalorder %s18, 0
      %p38 = por %p36, %p37
      %p39 = scmp.ne.s32.totalorder %s28, %s31
      %p40 = scmp.eq.s32.totalorder %s23, 1
      %p41 = por %p39, %p40
      %p42 = scmp.ne.s32.totalorder %s31, %s32
      %p43 = scmp.eq.s32.totalorder %s23, 0
      %p44 = por %p42, %p43
      %p45 = scmp.ne.s32.totalorder %s31, %s32
      %p46 = scmp.eq.s32.totalorder %s24, 1
      %p47 = por %p45, %p46
      %p49 = scmp.ne.s32.totalorder %s32, %s48
      %p50 = scmp.eq.s32.totalorder %s24, 0
      %p51 = por %p49, %p50
      %s52 = ssub.s32 %s18, %s25
      %p53 = scmp.eq.s32.totalorder %s52, 0
      %s55 = sadd.s32 %s54, 1
      %s56 = scalar_select %p53, %s54, %s55
      %p59 = pneg %p53
      %p60 = scmp.eq.s32.totalorder %s18, 1
      %p61 = por %p59, %p60
      %p62 = scmp.ne.s32.totalorder %s54, %s57
      %p63 = scmp.eq.s32.totalorder %s18, 0
      %p64 = por %p62, %p63
      %p65 = scmp.ne.s32.totalorder %s54, %s57
      %p66 = scmp.eq.s32.totalorder %s23, 1
      %p67 = por %p65, %p66
      %p68 = scmp.ne.s32.totalorder %s57, %s58
      %p69 = scmp.eq.s32.totalorder %s23, 0
      %p70 = por %p68, %p69
      %p71 = scmp.ne.s32.totalorder %s57, %s58
      %p72 = scmp.eq.s32.totalorder %s24, 1
      %p73 = por %p71, %p72
      %p75 = scmp.ne.s32.totalorder %s58, %s74
      %p76 = scmp.eq.s32.totalorder %s24, 0
      %p77 = por %p75, %p76
      %s79 = sadd.s32 %s78, 1
      %p82 = scmp.eq.s32.totalorder %s18, 1
      %p83 = scmp.ne.s32.totalorder %s78, %s80
      %p84 = scmp.eq.s32.totalorder %s18, 0
      %p85 = por %p83, %p84
      %p86 = scmp.ne.s32.totalorder %s78, %s80
      %p87 = scmp.eq.s32.totalorder %s23, 1
      %p88 = por %p86, %p87
      %p89 = scmp.ne.s32.totalorder %s80, %s81
      %p90 = scmp.eq.s32.totalorder %s23, 0
      %p91 = por %p89, %p90
      %p92 = scmp.ne.s32.totalorder %s80, %s81
      %p93 = scmp.eq.s32.totalorder %s24, 1
      %p94 = por %p92, %p93
      %p96 = scmp.ne.s32.totalorder %s81, %s95
      %p97 = scmp.eq.s32.totalorder %s24, 0
      %p98 = por %p96, %p97
      %s100 = sadd.s32 %s99, 1
      %p103 = scmp.eq.s32.totalorder %s18, 1
      %p104 = scmp.ne.s32.totalorder %s99, %s101
      %p105 = scmp.eq.s32.totalorder %s18, 0
      %p106 = por %p104, %p105
      %p107 = scmp.ne.s32.totalorder %s99, %s101
      %p108 = scmp.eq.s32.totalorder %s23, 1
      %p109 = por %p107, %p108
      %p110 = scmp.ne.s32.totalorder %s101, %s102
      %p111 = scmp.eq.s32.totalorder %s23, 0
      %p112 = por %p110, %p111
      %p113 = scmp.ne.s32.totalorder %s101, %s102
      %p114 = scmp.eq.s32.totalorder %s24, 1
      %p115 = por %p113, %p114
      %p117 = scmp.ne.s32.totalorder %s102, %s116
      %p118 = scmp.eq.s32.totalorder %s24, 0
      %p119 = por %p117, %p118
      %s121 = sadd.s32 %s120, 1
      %p124 = scmp.eq.s32.totalorder %s18, 1
      %p125 = scmp.ne.s32.totalorder %s120, %s122
      %p126 = scmp.eq.s32.totalorder %s18, 0
      %p127 = por %p125, %p126
      %p128 = scmp.ne.s32.totalorder %s120, %s122
      %p129 = scmp.eq.s32.totalorder %s23, 1
      %p130 = por %p128, %p129
      %p131 = scmp.ne.s32.totalorder %s122, %s123
      %p132 = scmp.eq.s32.totalorder %s23, 0
      %p133 = por %p131, %p132
      %p134 = scmp.ne.s32.totalorder %s122, %s123
      %p135 = scmp.eq.s32.totalorder %s24, 1
      %p136 = por %p134, %p135
      %p138 = scmp.ne.s32.totalorder %s123, %s137
      %p139 = scmp.eq.s32.totalorder %s24, 0
      %p140 = por %p138, %p139
      %s142 = sadd.s32 %s141, 1
      %p145 = scmp.eq.s32.totalorder %s18, 1
      %p146 = scmp.ne.s32.totalorder %s141, %s143
      %p147 = scmp.eq.s32.totalorder %s18, 0
      %p148 = por %p146, %p147
      %p149 = scmp.ne.s32.totalorder %s141, %s143
      %p150 = scmp.eq.s32.totalorder %s23, 1
      %p151 = por %p149, %p150
      %p152 = scmp.ne.s32.totalorder %s143, %s144
      %p153 = scmp.eq.s32.totalorder %s23, 0
      %p154 = por %p152, %p153
      %p155 = scmp.ne.s32.totalorder %s143, %s144
      %p156 = scmp.eq.s32.totalorder %s24, 1
      %p157 = por %p155, %p156
      %p159 = scmp.ne.s32.totalorder %s144, %s158
      %p160 = scmp.eq.s32.totalorder %s24, 0
      %p161 = por %p159, %p160
      %s163 = sadd.s32 %s162, 1
      %p166 = scmp.eq.s32.totalorder %s18, 1
      %p167 = scmp.ne.s32.totalorder %s162, %s164
      %p168 = scmp.eq.s32.totalorder %s18, 0
      %p169 = por %p167, %p168
      %p170 = scmp.ne.s32.totalorder %s162, %s164
      %p171 = scmp.eq.s32.totalorder %s23, 1
      %p172 = por %p170, %p171
      %p173 = scmp.ne.s32.totalorder %s164, %s165
      %p174 = scmp.eq.s32.totalorder %s23, 0
      %p175 = por %p173, %p174
      %p176 = scmp.ne.s32.totalorder %s164, %s165
      %p177 = scmp.eq.s32.totalorder %s24, 1
      %p178 = por %p176, %p177
      %p180 = scmp.ne.s32.totalorder %s165, %s179
      %p181 = scmp.eq.s32.totalorder %s24, 0
      %p182 = por %p180, %p181
      %s184 = sadd.s32 %s183, 1
      %p187 = scmp.eq.s32.totalorder %s18, 1
      %p188 = scmp.ne.s32.totalorder %s183, %s185
      %p189 = scmp.eq.s32.totalorder %s18, 0
      %p190 = por %p188, %p189
      %p191 = scmp.ne.s32.totalorder %s183, %s185
      %p192 = scmp.eq.s32.totalorder %s23, 1
      %p193 = por %p191, %p192
      %p194 = scmp.ne.s32.totalorder %s185, %s186
      %p195 = scmp.eq.s32.totalorder %s23, 0
      %p196 = por %p194, %p195
      %p197 = scmp.ne.s32.totalorder %s185, %s186
      %p198 = scmp.eq.s32.totalorder %s24, 1
      %p199 = por %p197, %p198
      %p201 = scmp.ne.s32.totalorder %s186, %s200
      %p202 = scmp.eq.s32.totalorder %s24, 0
      %p203 = por %p201, %p202
      %s205 = sadd.s32 %s204, 1
      %p208 = scmp.eq.s32.totalorder %s18, 1
      %p209 = scmp.ne.s32.totalorder %s204, %s206
      %p210 = scmp.eq.s32.totalorder %s18, 0
      %p211 = por %p209, %p210
      %p212 = scmp.ne.s32.totalorder %s204, %s206
      %p213 = scmp.eq.s32.totalorder %s23, 1
      %p214 = por %p212, %p213
      %p215 = scmp.ne.s32.totalorder %s206, %s207
      %p216 = scmp.eq.s32.totalorder %s23, 0
      %p217 = por %p215, %p216
      %p218 = scmp.ne.s32.totalorder %s206, %s207
      %p219 = scmp.eq.s32.totalorder %s24, 1
      %p220 = por %p218, %p219
      %p222 = scmp.ne.s32.totalorder %s207, %s221
      %p223 = scmp.eq.s32.totalorder %s24, 0
      %p224 = por %p222, %p223
      %s225 = ssub.s32 %s18, %s25
      %p226 = scmp.eq.s32.totalorder %s225, 0
      %s228 = sadd.s32 %s227, 1
      %s229 = scalar_select %p226, %s227, %s228
      %p232 = pneg %p226
      %p233 = scmp.eq.s32.totalorder %s18, 1
      %p234 = por %p232, %p233
      %p235 = scmp.ne.s32.totalorder %s227, %s230
      %p236 = scmp.eq.s32.totalorder %s18, 0
      %p237 = por %p235, %p236
      %p238 = scmp.ne.s32.totalorder %s227, %s230
      %p239 = scmp.eq.s32.totalorder %s23, 1
      %p240 = por %p238, %p239
      %p241 = scmp.ne.s32.totalorder %s230, %s231
      %p242 = scmp.eq.s32.totalorder %s23, 0
      %p243 = por %p241, %p242
      %p244 = scmp.ne.s32.totalorder %s230, %s231
      %p245 = scmp.eq.s32.totalorder %s24, 1
      %p246 = por %p244, %p245
      %p248 = scmp.ne.s32.totalorder %s231, %s247
      %p249 = scmp.eq.s32.totalorder %s24, 0
      %p250 = por %p248, %p249
      %p251 = scmp.le.s32.totalorder 1, %s18
      %p252 = scmp.lt.s32.totalorder %s18, 3
      %p253 = pnand %p251, %p252
      %p254 = pneg %p253
      // Predicated region
      $region9: #{tpu_custom_call.1} parent=5 // pred_check
        _
      $region10: #{tpu_custom_call.1} parent=5 // pred_check_branch
        %256 = sbr.rel (%p253) target = $region12
      $region11: #{tpu_custom_call.1} parent=5 // pred_region
        %s257 = ssub.s32 %s18, 1
        // Predicated region
        $region13: #{tpu_custom_call.1} parent=11 // pred_check
          %p258 = pneg %p91
        $region14: #{tpu_custom_call.1} parent=11 // pred_check_branch
          %260 = sbr.rel (%p258) target = $region16
        $region15: #{tpu_custom_call.1} parent=11 // pred_region
          _
        $region16: #{tpu_custom_call.1} parent=11 // pred_fallthru
          _
        // Predicated region
        $region17: #{tpu_custom_call.1} parent=11 // pred_check
          %p261 = pneg %p112
        $region18: #{tpu_custom_call.1} parent=11 // pred_check_branch
          %263 = sbr.rel (%p261) target = $region20
        $region19: #{tpu_custom_call.1} parent=11 // pred_region
          _
        $region20: #{tpu_custom_call.1} parent=11 // pred_fallthru
          _
        // Predicated region
        $region21: #{tpu_custom_call.1} parent=11 // pred_check
          %p264 = pneg %p133
        $region22: #{tpu_custom_call.1} parent=11 // pred_check_branch
          %266 = sbr.rel (%p264) target = $region24
        $region23: #{tpu_custom_call.1} parent=11 // pred_region
          _
        $region24: #{tpu_custom_call.1} parent=11 // pred_fallthru
          _
        // Predicated region
        $region25: #{tpu_custom_call.1} parent=11 // pred_check
          %p267 = pneg %p154
        $region26: #{tpu_custom_call.1} parent=11 // pred_check_branch
          %269 = sbr.rel (%p267) target = $region28
        $region27: #{tpu_custom_call.1} parent=11 // pred_region
          _
        $region28: #{tpu_custom_call.1} parent=11 // pred_fallthru
          _
        // Predicated region
        $region29: #{tpu_custom_call.1} parent=11 // pred_check
          %p270 = pneg %p175
        $region30: #{tpu_custom_call.1} parent=11 // pred_check_branch
          %272 = sbr.rel (%p270) target = $region32
        $region31: #{tpu_custom_call.1} parent=11 // pred_region
          _
        $region32: #{tpu_custom_call.1} parent=11 // pred_fallthru
          _
        // Predicated region
        $region33: #{tpu_custom_call.1} parent=11 // pred_check
          %p273 = pneg %p196
        $region34: #{tpu_custom_call.1} parent=11 // pred_check_branch
          %275 = sbr.rel (%p273) target = $region36
        $region35: #{tpu_custom_call.1} parent=11 // pred_region
          _
        $region36: #{tpu_custom_call.1} parent=11 // pred_fallthru
          _
        // Predicated region
        $region37: #{tpu_custom_call.1} parent=11 // pred_check
          %p276 = pneg %p217
        $region38: #{tpu_custom_call.1} parent=11 // pred_check_branch
          %278 = sbr.rel (%p276) target = $region40
        $region39: #{tpu_custom_call.1} parent=11 // pred_region
          _
        $region40: #{tpu_custom_call.1} parent=11 // pred_fallthru
          _
      $region12: #{tpu_custom_call.1} parent=5 // pred_fallthru
        _
      %p279 = scmp.lt.s32.totalorder %s18, 2
      // Predicated region
      $region41: #{tpu_custom_call.1} parent=5 // pred_check
        %p280 = pneg %p279
      $region42: #{tpu_custom_call.1} parent=5 // pred_check_branch
        %282 = sbr.rel (%p280) target = $region44
      $region43: #{tpu_custom_call.1} parent=5 // pred_region
        // Predicated region
        $region45: #{tpu_custom_call.1} parent=43 // pred_check
          %p283 = pneg %p38
        $region46: #{tpu_custom_call.1} parent=43 // pred_check_branch
          %285 = sbr.rel (%p283) target = $region48
        $region47: #{tpu_custom_call.1} parent=43 // pred_region
          %s286 = smul.u32 16, %s18
          %p287 = scmp.lt.s32.totalorder %s286, 31
          %s288 = scalar_select %p287, %s286, 31
          %s289 = smul.addr %s288, 8
          %s290 = scalar_lea.vmem %s0, %s289
          %s291 = smul.u32 16, %s18
        $region48: #{tpu_custom_call.1} parent=43 // pred_fallthru
          _
        // Predicated region
        $region49: #{tpu_custom_call.1} parent=43 // pred_check
          %p292 = pneg %p64
        $region50: #{tpu_custom_call.1} parent=43 // pred_check_branch
          %294 = sbr.rel (%p292) target = $region52
        $region51: #{tpu_custom_call.1} parent=43 // pred_region
          %s295 = smul.u32 16, %s18
          %p296 = scmp.lt.s32.totalorder %s295, 31
          %s297 = scalar_select %p296, %s295, 31
          %s298 = smul.addr %s297, 8
          %s299 = scalar_lea.vmem %s1, %s298
          %s300 = smul.u32 16, %s18
        $region52: #{tpu_custom_call.1} parent=43 // pred_fallthru
          _
      $region44: #{tpu_custom_call.1} parent=5 // pred_fallthru
        _
      %p301 = scmp.le.s32.totalorder 1, %s18
      %p302 = scmp.lt.s32.totalorder %s18, 3
      %p303 = pnand %p301, %p302
      %p304 = pneg %p303
      // Predicated region
      $region53: #{tpu_custom_call.1} parent=5 // pred_check
        _
      $region54: #{tpu_custom_call.1} parent=5 // pred_check_branch
        %306 = sbr.rel (%p303) target = $region56
      $region55: #{tpu_custom_call.1} parent=5 // pred_region
        %s307 = ssub.s32 %s18, 1
        %s308 = smul.u32 16, %s23
        %p309 = scmp.lt.s32.totalorder %s308, 31
        %s310 = scalar_select %p309, %s308, 31
        %s311 = smul.addr %s310, 8
        %s312 = scalar_lea.vmem %s0, %s311
        %p313 = pneg %p44
        %p314 = pneg %p41
        %s315 = smul.u32 16, %s23
        %p316 = scmp.lt.s32.totalorder %s315, 31
        %s317 = scalar_select %p316, %s315, 31
        %s318 = smul.addr %s317, 8
        %s319 = scalar_lea.vmem %s1, %s318
        %p320 = pneg %p70
        %p321 = pneg %p67
        %p322 = pneg %p91
        %p323 = pneg %p88
        %p324 = pneg %p112
        %p325 = pneg %p109
        %p326 = pneg %p133
        %p327 = pneg %p130
        %p328 = pneg %p154
        %p329 = pneg %p151
        %p330 = pneg %p175
        %p331 = pneg %p172
        %p332 = pneg %p196
        %p333 = pneg %p193
        %p334 = pneg %p217
        %p335 = pneg %p214
        %p336 = pneg %p243
        %p337 = pneg %p240
        %s338 = sand.u32 %s230, 1
        %s339 = scalar_lea.sflag [#allocation3], %s338
        %s340 = sand.u32 %s230, 1
        %s341 = smul.addr %s340, 8
        %s342 = scalar_lea.vmem [#allocation2], %s341
        %s343 = smul.u32 16, %s23
        %p344 = scmp.lt.s32.totalorder %s343, 31
        %s345 = scalar_select %p344, %s343, 31
        %s346 = smul.addr %s345, 8
        %s347 = scalar_lea.vmem %s0, %s346
        %s348 = smul.u32 16, %s23
        %s349 = smul.u32 16, %s23
        %p350 = scmp.lt.s32.totalorder %s349, 31
        %s351 = scalar_select %p350, %s349, 31
        %s352 = smul.addr %s351, 8
        %s353 = scalar_lea.vmem %s1, %s352
        %s354 = smul.u32 16, %s23
        %v356 = vld [vmem:[%s347] sm:$0xff]
        %v357 = vld [vmem:[%s347 + $0x8] sm:$0xff]
        %v358 = vld [vmem:[%s347 + $0x10] sm:$0xff]
        %v359 = vld [vmem:[%s347 + $0x18] sm:$0xff]
        %v360 = vld [vmem:[%s347 + $0x20] sm:$0xff]
        %v361 = vld [vmem:[%s347 + $0x28] sm:$0xff]
        %v362 = vld [vmem:[%s347 + $0x30] sm:$0xff]
        %v363 = vld [vmem:[%s347 + $0x38] sm:$0xff]
        %v364 = vld [vmem:[%s347 + $0x40] sm:$0xff]
        %v365 = vld [vmem:[%s347 + $0x48] sm:$0xff]
        %v366 = vld [vmem:[%s347 + $0x50] sm:$0xff]
        %v367 = vld [vmem:[%s347 + $0x58] sm:$0xff]
        %v368 = vld [vmem:[%s347 + $0x60] sm:$0xff]
        %v369 = vld [vmem:[%s347 + $0x68] sm:$0xff]
        %v370 = vld [vmem:[%s347 + $0x70] sm:$0xff]
        %v371 = vld [vmem:[%s347 + $0x78] sm:$0xff]
        %v372 = vpack.c.bf16 %v357, %v356
        %v373 = vpack.c.bf16 %v359, %v358
        %v374 = vpack.c.bf16 %v361, %v360
        %v375 = vpack.c.bf16 %v363, %v362
        %v376 = vpack.c.bf16 %v365, %v364
        %v377 = vpack.c.bf16 %v367, %v366
        %v378 = vpack.c.bf16 %v369, %v368
        %v379 = vpack.c.bf16 %v371, %v370
        %v380 = vld [vmem:[%s353] sm:$0xff]
        %v381 = vld [vmem:[%s353 + $0x8] sm:$0xff]
        %v382 = vld [vmem:[%s353 + $0x10] sm:$0xff]
        %v383 = vld [vmem:[%s353 + $0x18] sm:$0xff]
        %v384 = vld [vmem:[%s353 + $0x20] sm:$0xff]
        %v385 = vld [vmem:[%s353 + $0x28] sm:$0xff]
        %v386 = vld [vmem:[%s353 + $0x30] sm:$0xff]
        %v387 = vld [vmem:[%s353 + $0x38] sm:$0xff]
        %v388 = vld [vmem:[%s353 + $0x40] sm:$0xff]
        %v389 = vld [vmem:[%s353 + $0x48] sm:$0xff]
        %v390 = vld [vmem:[%s353 + $0x50] sm:$0xff]
        %v391 = vld [vmem:[%s353 + $0x58] sm:$0xff]
        %v392 = vld [vmem:[%s353 + $0x60] sm:$0xff]
        %v393 = vld [vmem:[%s353 + $0x68] sm:$0xff]
        %v394 = vld [vmem:[%s353 + $0x70] sm:$0xff]
        %v395 = vld [vmem:[%s353 + $0x78] sm:$0xff]
        %v396 = vlaneseq
        %v397 = vand.u32 %v396, 127
        %398 = vset.pattern.permute.xlu0 0
        %399 = vperm.xlu0 %398, %v380
        %v400 = vpop.permute.xlu0 %399
        %401 = vset.pattern.permute.xlu0 0
        %402 = vperm.xlu0 %401, %v381
        %v403 = vpop.permute.xlu0 %402
        %404 = vset.pattern.permute.xlu0 0
        %405 = vperm.xlu0 %404, %v382
        %v406 = vpop.permute.xlu0 %405
        %407 = vset.pattern.permute.xlu0 0
        %408 = vperm.xlu0 %407, %v383
        %v409 = vpop.permute.xlu0 %408
        %410 = vset.pattern.permute.xlu0 0
        %411 = vperm.xlu0 %410, %v384
        %v412 = vpop.permute.xlu0 %411
        %413 = vset.pattern.permute.xlu0 0
        %414 = vperm.xlu0 %413, %v385
        %v415 = vpop.permute.xlu0 %414
        %416 = vset.pattern.permute.xlu0 0
        %417 = vperm.xlu0 %416, %v386
        %v418 = vpop.permute.xlu0 %417
        %419 = vset.pattern.permute.xlu0 0
        %420 = vperm.xlu0 %419, %v387
        %v421 = vpop.permute.xlu0 %420
        %422 = vset.pattern.permute.xlu0 0
        %423 = vperm.xlu0 %422, %v388
        %v424 = vpop.permute.xlu0 %423
        %425 = vset.pattern.permute.xlu0 0
        %426 = vperm.xlu0 %425, %v389
        %v427 = vpop.permute.xlu0 %426
        %428 = vset.pattern.permute.xlu0 0
        %429 = vperm.xlu0 %428, %v390
        %v430 = vpop.permute.xlu0 %429
        %431 = vset.pattern.permute.xlu0 0
        %432 = vperm.xlu0 %431, %v391
        %v433 = vpop.permute.xlu0 %432
        %434 = vset.pattern.permute.xlu0 0
        %435 = vperm.xlu0 %434, %v392
        %v436 = vpop.permute.xlu0 %435
        %437 = vset.pattern.permute.xlu0 0
        %438 = vperm.xlu0 %437, %v393
        %v439 = vpop.permute.xlu0 %438
        %440 = vset.pattern.permute.xlu0 0
        %441 = vperm.xlu0 %440, %v394
        %v442 = vpop.permute.xlu0 %441
        %443 = vset.pattern.permute.xlu0 0
        %444 = vperm.xlu0 %443, %v395
        %v445 = vpop.permute.xlu0 %444
        %vm446 = vcmp.eq.s32.totalorder %v397, %v400
        %vm447 = vcmp.eq.s32.totalorder %v397, %v403
        %vm448 = vcmp.eq.s32.totalorder %v397, %v406
        %vm449 = vcmp.eq.s32.totalorder %v397, %v409
        %vm450 = vcmp.eq.s32.totalorder %v397, %v412
        %vm451 = vcmp.eq.s32.totalorder %v397, %v415
        %vm452 = vcmp.eq.s32.totalorder %v397, %v418
        %vm453 = vcmp.eq.s32.totalorder %v397, %v421
        %vm454 = vcmp.eq.s32.totalorder %v397, %v424
        %vm455 = vcmp.eq.s32.totalorder %v397, %v427
        %vm456 = vcmp.eq.s32.totalorder %v397, %v430
        %vm457 = vcmp.eq.s32.totalorder %v397, %v433
        %vm458 = vcmp.eq.s32.totalorder %v397, %v436
        %vm459 = vcmp.eq.s32.totalorder %v397, %v439
        %vm460 = vcmp.eq.s32.totalorder %v397, %v442
        %vm461 = vcmp.eq.s32.totalorder %v397, %v445
        %v462 = vsel %vm446, 1, 0
        %v463 = vsel %vm447, 1, 0
        %v464 = vsel %vm448, 1, 0
        %v465 = vsel %vm449, 1, 0
        %v466 = vsel %vm450, 1, 0
        %v467 = vsel %vm451, 1, 0
        %v468 = vsel %vm452, 1, 0
        %v469 = vsel %vm453, 1, 0
        %v470 = vsel %vm454, 1, 0
        %v471 = vsel %vm455, 1, 0
        %v472 = vsel %vm456, 1, 0
        %v473 = vsel %vm457, 1, 0
        %v474 = vsel %vm458, 1, 0
        %v475 = vsel %vm459, 1, 0
        %v476 = vsel %vm460, 1, 0
        %v477 = vsel %vm461, 1, 0
        %v478 = vcvt.s32.f32 %v462
        %v479 = vcvt.s32.f32 %v463
        %v480 = vcvt.s32.f32 %v464
        %v481 = vcvt.s32.f32 %v465
        %v482 = vcvt.s32.f32 %v466
        %v483 = vcvt.s32.f32 %v467
        %v484 = vcvt.s32.f32 %v468
        %v485 = vcvt.s32.f32 %v469
        %v486 = vcvt.s32.f32 %v470
        %v487 = vcvt.s32.f32 %v471
        %v488 = vcvt.s32.f32 %v472
        %v489 = vcvt.s32.f32 %v473
        %v490 = vcvt.s32.f32 %v474
        %v491 = vcvt.s32.f32 %v475
        %v492 = vcvt.s32.f32 %v476
        %v493 = vcvt.s32.f32 %v477
        %v494 = vpack.c.bf16 %v479, %v478
        %v495 = vpack.c.bf16 %v481, %v480
        %v496 = vpack.c.bf16 %v483, %v482
        %v497 = vpack.c.bf16 %v485, %v484
        %v498 = vpack.c.bf16 %v487, %v486
        %v499 = vpack.c.bf16 %v489, %v488
        %v500 = vpack.c.bf16 %v491, %v490
        %v501 = vpack.c.bf16 %v493, %v492
        %v502 = vld [vmem:[%s2] sm:$0xf]
        %v503 = vld [vmem:[%s2 + $0x4] sm:$0xf]
        %v504 = vld [vmem:[%s3] sm:$0x3]
        %vm505 = vcmask 31744
        %v507 = vsel %vm505, %v494, 0
        %v510 = vsel %vm505, %v495, 0
        %v513 = vsel %vm505, %v496, 0
        %v516 = vsel %vm505, %v497, 0
        %v519 = vsel %vm505, %v498, 0
        %v522 = vsel %vm505, %v499, 0
        %v525 = vsel %vm505, %v500, 0
        %v528 = vsel %vm505, %v501, 0
        %vm530 = vcmask 1041408
        %v532 = vsel %vm530, %v504, 0
        %534 = vmatprep.subr.bf16.mxu0 0
        %535 = vmatpush1.bf16.msra.mxu0 %v532
        %536 = vmatprep.subr.bf16.mxu0 0
        %537 = vmatpush1.bf16.msra.mxu0 0
        %538 = vmatprep.subr.bf16.mxu0 0
        %539 = vmatpush1.bf16.msra.mxu0 0
        %540 = vmatprep.subr.bf16.mxu0 0
        %541 = vmatpush1.bf16.msra.mxu0 0
        %542 = vmatprep.subr.bf16.mxu0 0
        %543 = vmatpush1.bf16.msra.mxu0 0
        %544 = vmatprep.subr.bf16.mxu0 0
        %545 = vmatpush1.bf16.msra.mxu0 0
        %546 = vmatprep.subr.bf16.mxu0 0
        %547 = vmatpush1.bf16.msra.mxu0 0
        %548 = vmatprep.subr.bf16.mxu0 0
        %549 = vmatpush1.bf16.msra.mxu0 0
        %550 = vmatprep.subr.bf16.mxu0 0
        %551 = vmatpush1.bf16.msra.mxu0 0
        %552 = vmatprep.subr.bf16.mxu0 0
        %553 = vmatpush1.bf16.msra.mxu0 0
        %554 = vmatprep.subr.bf16.mxu0 0
        %555 = vmatpush1.bf16.msra.mxu0 0
        %556 = vmatprep.subr.bf16.mxu0 0
        %557 = vmatpush1.bf16.msra.mxu0 0
        %558 = vmatprep.subr.bf16.mxu0 0
        %559 = vmatpush1.bf16.msra.mxu0 0
        %560 = vmatprep.subr.bf16.mxu0 0
        %561 = vmatpush1.bf16.msra.mxu0 0
        %562 = vmatprep.subr.bf16.mxu0 0
        %563 = vmatpush1.bf16.msra.mxu0 0
        %564 = vmatprep.subr.bf16.mxu0 0
        %565 = vmatpush1.bf16.msra.mxu0 0
        %566 = vmatprep.mubr.bf16.mxu0 0
        %567 = vmatmul.mubr.bf16.gmra.mrb[0].mxu0 %v507
        %v568 = vpop.f32.mrb[0].mxu0
        %v569 = vadd.f32 0.0, %v568
        %v570 = vpop.f32.mrb[0].mxu0
        %v571 = vpop.f32.mrb[0].mxu0
        %v572 = vadd.f32 0.0, %v571
        %v573 = vpop.f32.mrb[0].mxu0
        %574 = vmatprep.mubr.bf16.mxu0 0
        %575 = vmatmul.mubr.bf16.gmra.mrb[0].mxu0 %v510
        %v576 = vpop.f32.mrb[0].mxu0
        %v577 = vadd.f32 0.0, %v576
        %v578 = vpop.f32.mrb[0].mxu0
        %v579 = vpop.f32.mrb[0].mxu0
        %v580 = vadd.f32 0.0, %v579
        %v581 = vpop.f32.mrb[0].mxu0
        %582 = vmatprep.mubr.bf16.mxu0 0
        %583 = vmatmul.mubr.bf16.gmra.mrb[0].mxu0 %v513
        %v584 = vpop.f32.mrb[0].mxu0
        %v585 = vadd.f32 0.0, %v584
        %v586 = vpop.f32.mrb[0].mxu0
        %v587 = vpop.f32.mrb[0].mxu0
        %v588 = vadd.f32 0.0, %v587
        %v589 = vpop.f32.mrb[0].mxu0
        %590 = vmatprep.mubr.bf16.mxu0 0
        %591 = vmatmul.mubr.bf16.gmra.mrb[0].mxu0 %v516
        %v592 = vpop.f32.mrb[0].mxu0
        %v593 = vadd.f32 0.0, %v592
        %v594 = vpop.f32.mrb[0].mxu0
        %v595 = vpop.f32.mrb[0].mxu0
        %v596 = vadd.f32 0.0, %v595
        %v597 = vpop.f32.mrb[0].mxu0
        %598 = vmatprep.mubr.bf16.mxu0 0
        %599 = vmatmul.mubr.bf16.gmra.mrb[0].mxu0 %v519
        %v600 = vpop.f32.mrb[0].mxu0
        %v601 = vadd.f32 0.0, %v600
        %v602 = vpop.f32.mrb[0].mxu0
        %v603 = vpop.f32.mrb[0].mxu0
        %v604 = vadd.f32 0.0, %v603
        %v605 = vpop.f32.mrb[0].mxu0
        %606 = vmatprep.mubr.bf16.mxu0 0
        %607 = vmatmul.mubr.bf16.gmra.mrb[0].mxu0 %v522
        %v608 = vpop.f32.mrb[0].mxu0
        %v609 = vadd.f32 0.0, %v608
        %v610 = vpop.f32.mrb[0].mxu0
        %v611 = vpop.f32.mrb[0].mxu0
        %v612 = vadd.f32 0.0, %v611
        %v613 = vpop.f32.mrb[0].mxu0
        %614 = vmatprep.mubr.bf16.mxu0 0
        %615 = vmatmul.mubr.bf16.gmra.mrb[0].mxu0 %v525
        %v616 = vpop.f32.mrb[0].mxu0
        %v617 = vadd.f32 0.0, %v616
        %v618 = vpop.f32.mrb[0].mxu0
        %v619 = vpop.f32.mrb[0].mxu0
        %v620 = vadd.f32 0.0, %v619
        %v621 = vpop.f32.mrb[0].mxu0
        %622 = vmatprep.mubr.bf16.mxu0 0
        %623 = vmatmul.mubr.bf16.gmra.mrb[0].mxu0 %v528
        %v624 = vpop.f32.mrb[0].mxu0
        %v625 = vadd.f32 0.0, %v624
        %v626 = vpop.f32.mrb[0].mxu0
        %v627 = vpop.f32.mrb[0].mxu0
        %v628 = vadd.f32 0.0, %v627
        %v629 = vpop.f32.mrb[0].mxu0
        %630 = vdwg.mxu0
        %v633 = vunpack.c.l.b16 %v502
        %v634 = vunpack.c.l.b16 %v503
        %v635 = vpack.c.b16 %v634, %v633
        %vm637 = vcmask 130048
        %v639 = vsel %vm637, %v372, 0
        %v642 = vsel %vm637, %v373, 0
        %v645 = vsel %vm637, %v374, 0
        %v648 = vsel %vm637, %v375, 0
        %v651 = vsel %vm637, %v376, 0
        %v654 = vsel %vm637, %v377, 0
        %v657 = vsel %vm637, %v378, 0
        %v660 = vsel %vm637, %v379, 0
        %662 = vmatprep.subr.bf16.mxu0 0
        %663 = vmatpush1.bf16.msra.mxu0 %v635
        %664 = vmatprep.subr.bf16.mxu0 0
        %665 = vmatpush1.bf16.msra.mxu0 0
        %666 = vmatprep.subr.bf16.mxu0 0
        %667 = vmatpush1.bf16.msra.mxu0 0
        %668 = vmatprep.subr.bf16.mxu0 0
        %669 = vmatpush1.bf16.msra.mxu0 0
        %670 = vmatprep.subr.bf16.mxu0 0
        %671 = vmatpush1.bf16.msra.mxu0 0
        %672 = vmatprep.subr.bf16.mxu0 0
        %673 = vmatpush1.bf16.msra.mxu0 0
        %674 = vmatprep.subr.bf16.mxu0 0
        %675 = vmatpush1.bf16.msra.mxu0 0
        %676 = vmatprep.subr.bf16.mxu0 0
        %677 = vmatpush1.bf16.msra.mxu0 0
        %678 = vmatprep.subr.bf16.mxu0 0
        %679 = vmatpush1.bf16.msra.mxu0 0
        %680 = vmatprep.subr.bf16.mxu0 0
        %681 = vmatpush1.bf16.msra.mxu0 0
        %682 = vmatprep.subr.bf16.mxu0 0
        %683 = vmatpush1.bf16.msra.mxu0 0
        %684 = vmatprep.subr.bf16.mxu0 0
        %685 = vmatpush1.bf16.msra.mxu0 0
        %686 = vmatprep.subr.bf16.mxu0 0
        %687 = vmatpush1.bf16.msra.mxu0 0
        %688 = vmatprep.subr.bf16.mxu0 0
        %689 = vmatpush1.bf16.msra.mxu0 0
        %690 = vmatprep.subr.bf16.mxu0 0
        %691 = vmatpush1.bf16.msra.mxu0 0
        %692 = vmatprep.subr.bf16.mxu0 0
        %693 = vmatpush1.bf16.msra.mxu0 0
        %694 = vmatprep.mubr.bf16.mxu0 0
        %695 = vmatmul.mubr.bf16.gmra.mrb[0].mxu0 %v639
        %v696 = vpop.f32.mrb[0].mxu0
        %v697 = vadd.f32 %v569, %v696
        %v698 = vpop.f32.mrb[0].mxu0
        %v699 = vpop.f32.mrb[0].mxu0
        %v700 = vadd.f32 %v572, %v699
        %v701 = vpop.f32.mrb[0].mxu0
        %702 = vmatprep.mubr.bf16.mxu0 0
        %703 = vmatmul.mubr.bf16.gmra.mrb[0].mxu0 %v642
        %v704 = vpop.f32.mrb[0].mxu0
        %v705 = vadd.f32 %v577, %v704
        %v706 = vpop.f32.mrb[0].mxu0
        %v707 = vpop.f32.mrb[0].mxu0
        %v708 = vadd.f32 %v580, %v707
        %v709 = vpop.f32.mrb[0].mxu0
        %710 = vmatprep.mubr.bf16.mxu0 0
        %711 = vmatmul.mubr.bf16.gmra.mrb[0].mxu0 %v645
        %v712 = vpop.f32.mrb[0].mxu0
        %v713 = vadd.f32 %v585, %v712
        %v714 = vpop.f32.mrb[0].mxu0
        %v715 = vpop.f32.mrb[0].mxu0
        %v716 = vadd.f32 %v588, %v715
        %v717 = vpop.f32.mrb[0].mxu0
        %718 = vmatprep.mubr.bf16.mxu0 0
        %719 = vmatmul.mubr.bf16.gmra.mrb[0].mxu0 %v648
        %v720 = vpop.f32.mrb[0].mxu0
        %v721 = vadd.f32 %v593, %v720
        %v722 = vpop.f32.mrb[0].mxu0
        %v723 = vpop.f32.mrb[0].mxu0
        %v724 = vadd.f32 %v596, %v723
        %v725 = vpop.f32.mrb[0].mxu0
        %726 = vmatprep.mubr.bf16.mxu0 0
        %727 = vmatmul.mubr.bf16.gmra.mrb[0].mxu0 %v651
        %v728 = vpop.f32.mrb[0].mxu0
        %v729 = vadd.f32 %v601, %v728
        %v730 = vpop.f32.mrb[0].mxu0
        %v731 = vpop.f32.mrb[0].mxu0
        %v732 = vadd.f32 %v604, %v731
        %v733 = vpop.f32.mrb[0].mxu0
        %734 = vmatprep.mubr.bf16.mxu0 0
        %735 = vmatmul.mubr.bf16.gmra.mrb[0].mxu0 %v654
        %v736 = vpop.f32.mrb[0].mxu0
        %v737 = vadd.f32 %v609, %v736
        %v738 = vpop.f32.mrb[0].mxu0
        %v739 = vpop.f32.mrb[0].mxu0
        %v740 = vadd.f32 %v612, %v739
        %v741 = vpop.f32.mrb[0].mxu0
        %742 = vmatprep.mubr.bf16.mxu0 0
        %743 = vmatmul.mubr.bf16.gmra.mrb[0].mxu0 %v657
        %v744 = vpop.f32.mrb[0].mxu0
        %v745 = vadd.f32 %v617, %v744
        %v746 = vpop.f32.mrb[0].mxu0
        %v747 = vpop.f32.mrb[0].mxu0
        %v748 = vadd.f32 %v620, %v747
        %v749 = vpop.f32.mrb[0].mxu0
        %750 = vmatprep.mubr.bf16.mxu0 0
        %751 = vmatmul.mubr.bf16.gmra.mrb[0].mxu0 %v660
        %v752 = vpop.f32.mrb[0].mxu0
        %v753 = vadd.f32 %v625, %v752
        %v754 = vpop.f32.mrb[0].mxu0
        %v755 = vpop.f32.mrb[0].mxu0
        %v756 = vadd.f32 %v628, %v755
        %v757 = vpop.f32.mrb[0].mxu0
        %758 = vdwg.mxu0
        %v759 = vld [vmem:[%s4] sm:$0x1]
        %v761 = vlaneseq
        %v762 = vshrl.u32 %v761, 7
        %v763 = vsub.s32 0, %v762
        %v764 = vrot.slane %v759, %v763
        %v766 = vadd.f32 %v697, %v764
        %v767 = vadd.f32 %v700, %v764
        %v768 = vadd.f32 %v705, %v764
        %v769 = vadd.f32 %v708, %v764
        %v770 = vadd.f32 %v713, %v764
        %v771 = vadd.f32 %v716, %v764
        %v772 = vadd.f32 %v721, %v764
        %v773 = vadd.f32 %v724, %v764
        %v774 = vadd.f32 %v729, %v764
        %v775 = vadd.f32 %v732, %v764
        %v776 = vadd.f32 %v737, %v764
        %v777 = vadd.f32 %v740, %v764
        %v778 = vadd.f32 %v745, %v764
        %v779 = vadd.f32 %v748, %v764
        %v780 = vadd.f32 %v753, %v764
        %v781 = vadd.f32 %v756, %v764
        %v782 = vmax.f32 %v766, 0.0
        %v783 = vmax.f32 %v767, 0.0
        %v784 = vmax.f32 %v768, 0.0
        %v785 = vmax.f32 %v769, 0.0
        %v786 = vmax.f32 %v770, 0.0
        %v787 = vmax.f32 %v771, 0.0
        %v788 = vmax.f32 %v772, 0.0
        %v789 = vmax.f32 %v773, 0.0
        %v790 = vmax.f32 %v774, 0.0
        %v791 = vmax.f32 %v775, 0.0
        %v792 = vmax.f32 %v776, 0.0
        %v793 = vmax.f32 %v777, 0.0
        %v794 = vmax.f32 %v778, 0.0
        %v795 = vmax.f32 %v779, 0.0
        %v796 = vmax.f32 %v780, 0.0
        %v797 = vmax.f32 %v781, 0.0
        %v798 = vpack.c.bf16 %v783, %v782
        %v799 = vpack.c.bf16 %v785, %v784
        %v800 = vpack.c.bf16 %v787, %v786
        %v801 = vpack.c.bf16 %v789, %v788
        %v802 = vpack.c.bf16 %v791, %v790
        %v803 = vpack.c.bf16 %v793, %v792
        %v804 = vpack.c.bf16 %v795, %v794
        %v805 = vpack.c.bf16 %v797, %v796
        %v806 = vld [vmem:[%s5] sm:$0xf]
        %v807 = vld [vmem:[%s5 + $0x4] sm:$0xf]
        %v808 = vld [vmem:[%s5 + $0x8] sm:$0xf]
        %v809 = vld [vmem:[%s5 + $0xc] sm:$0xf]
        %v810 = vld [vmem:[%s5 + $0x10] sm:$0xf]
        %v811 = vld [vmem:[%s5 + $0x14] sm:$0xf]
        %v812 = vld [vmem:[%s5 + $0x18] sm:$0xf]
        %v813 = vld [vmem:[%s5 + $0x1c] sm:$0xf]
        %v814 = vld [vmem:[%s5 + $0x20] sm:$0xf]
        %v815 = vld [vmem:[%s5 + $0x24] sm:$0xf]
        %v816 = vld [vmem:[%s5 + $0x28] sm:$0xf]
        %v817 = vld [vmem:[%s5 + $0x2c] sm:$0xf]
        %v818 = vld [vmem:[%s5 + $0x30] sm:$0xf]
        %v819 = vld [vmem:[%s5 + $0x34] sm:$0xf]
        %v820 = vld [vmem:[%s5 + $0x38] sm:$0xf]
        %v821 = vld [vmem:[%s5 + $0x3c] sm:$0xf]
        %v822 = vld [vmem:[%s6] sm:$0x1]
        %v824 = vlaneseq
        %v825 = vshrl.u32 %v824, 7
        %v826 = vsub.s32 0, %v825
        %v827 = vrot.slane %v822, %v826
        %v845 = vunpack.c.l.b16 %v806
        %v846 = vunpack.c.l.b16 %v807
        %v847 = vunpack.c.l.b16 %v808
        %v848 = vunpack.c.l.b16 %v809
        %v849 = vunpack.c.l.b16 %v810
        %v850 = vunpack.c.l.b16 %v811
        %v851 = vunpack.c.l.b16 %v812
        %v852 = vunpack.c.l.b16 %v813
        %v853 = vunpack.c.l.b16 %v814
        %v854 = vunpack.c.l.b16 %v815
        %v855 = vunpack.c.l.b16 %v816
        %v856 = vunpack.c.l.b16 %v817
        %v857 = vunpack.c.l.b16 %v818
        %v858 = vunpack.c.l.b16 %v819
        %v859 = vunpack.c.l.b16 %v820
        %v860 = vunpack.c.l.b16 %v821
        %v861 = vpack.c.b16 %v846, %v845
        %v862 = vpack.c.b16 %v848, %v847
        %v863 = vpack.c.b16 %v850, %v849
        %v864 = vpack.c.b16 %v852, %v851
        %v865 = vpack.c.b16 %v854, %v853
        %v866 = vpack.c.b16 %v856, %v855
        %v867 = vpack.c.b16 %v858, %v857
        %v868 = vpack.c.b16 %v860, %v859
        %877 = vmatprep.subr.bf16.mxu0 0
        %878 = vmatpush1.bf16.msra.mxu0 %v861
        %879 = vmatprep.subr.bf16.mxu0 0
        %880 = vmatpush1.bf16.msra.mxu0 %v862
        %881 = vmatprep.subr.bf16.mxu0 0
        %882 = vmatpush1.bf16.msra.mxu0 %v863
        %883 = vmatprep.subr.bf16.mxu0 0
        %884 = vmatpush1.bf16.msra.mxu0 %v864
        %885 = vmatprep.subr.bf16.mxu0 0
        %886 = vmatpush1.bf16.msra.mxu0 %v865
        %887 = vmatprep.subr.bf16.mxu0 0
        %888 = vmatpush1.bf16.msra.mxu0 %v866
        %889 = vmatprep.subr.bf16.mxu0 0
        %890 = vmatpush1.bf16.msra.mxu0 %v867
        %891 = vmatprep.subr.bf16.mxu0 0
        %892 = vmatpush1.bf16.msra.mxu0 %v868
        %893 = vmatprep.subr.bf16.mxu0 0
        %894 = vmatpush1.bf16.msra.mxu0 0
        %895 = vmatprep.subr.bf16.mxu0 0
        %896 = vmatpush1.bf16.msra.mxu0 0
        %897 = vmatprep.subr.bf16.mxu0 0
        %898 = vmatpush1.bf16.msra.mxu0 0
        %899 = vmatprep.subr.bf16.mxu0 0
        %900 = vmatpush1.bf16.msra.mxu0 0
        %901 = vmatprep.subr.bf16.mxu0 0
        %902 = vmatpush1.bf16.msra.mxu0 0
        %903 = vmatprep.subr.bf16.mxu0 0
        %904 = vmatpush1.bf16.msra.mxu0 0
        %905 = vmatprep.subr.bf16.mxu0 0
        %906 = vmatpush1.bf16.msra.mxu0 0
        %907 = vmatprep.subr.bf16.mxu0 0
        %908 = vmatpush1.bf16.msra.mxu0 0
        %909 = vmatprep.mubr.bf16.mxu0 0
        %910 = vmatmul.mubr.bf16.gmra.mrb[0].mxu0 %v798
        %v911 = vpop.f32.mrb[0].mxu0
        %v912 = vadd.f32 %v827, %v911
        %v913 = vpop.f32.mrb[0].mxu0
        %v914 = vpop.f32.mrb[0].mxu0
        %v915 = vadd.f32 %v827, %v914
        %v916 = vpop.f32.mrb[0].mxu0
        %917 = vmatprep.mubr.bf16.mxu0 0
        %918 = vmatmul.mubr.bf16.gmra.mrb[0].mxu0 %v799
        %v919 = vpop.f32.mrb[0].mxu0
        %v920 = vadd.f32 %v827, %v919
        %v921 = vpop.f32.mrb[0].mxu0
        %v922 = vpop.f32.mrb[0].mxu0
        %v923 = vadd.f32 %v827, %v922
        %v924 = vpop.f32.mrb[0].mxu0
        %925 = vmatprep.mubr.bf16.mxu0 0
        %926 = vmatmul.mubr.bf16.gmra.mrb[0].mxu0 %v800
        %v927 = vpop.f32.mrb[0].mxu0
        %v928 = vadd.f32 %v827, %v927
        %v929 = vpop.f32.mrb[0].mxu0
        %v930 = vpop.f32.mrb[0].mxu0
        %v931 = vadd.f32 %v827, %v930
        %v932 = vpop.f32.mrb[0].mxu0
        %933 = vmatprep.mubr.bf16.mxu0 0
        %934 = vmatmul.mubr.bf16.gmra.mrb[0].mxu0 %v801
        %v935 = vpop.f32.mrb[0].mxu0
        %v936 = vadd.f32 %v827, %v935
        %v937 = vpop.f32.mrb[0].mxu0
        %v938 = vpop.f32.mrb[0].mxu0
        %v939 = vadd.f32 %v827, %v938
        %v940 = vpop.f32.mrb[0].mxu0
        %941 = vmatprep.mubr.bf16.mxu0 0
        %942 = vmatmul.mubr.bf16.gmra.mrb[0].mxu0 %v802
        %v943 = vpop.f32.mrb[0].mxu0
        %v944 = vadd.f32 %v827, %v943
        %v945 = vpop.f32.mrb[0].mxu0
        %v946 = vpop.f32.mrb[0].mxu0
        %v947 = vadd.f32 %v827, %v946
        %v948 = vpop.f32.mrb[0].mxu0
        %949 = vmatprep.mubr.bf16.mxu0 0
        %950 = vmatmul.mubr.bf16.gmra.mrb[0].mxu0 %v803
        %v951 = vpop.f32.mrb[0].mxu0
        %v952 = vadd.f32 %v827, %v951
        %v953 = vpop.f32.mrb[0].mxu0
        %v954 = vpop.f32.mrb[0].mxu0
        %v955 = vadd.f32 %v827, %v954
        %v956 = vpop.f32.mrb[0].mxu0
        %957 = vmatprep.mubr.bf16.mxu0 0
        %958 = vmatmul.mubr.bf16.gmra.mrb[0].mxu0 %v804
        %v959 = vpop.f32.mrb[0].mxu0
        %v960 = vadd.f32 %v827, %v959
        %v961 = vpop.f32.mrb[0].mxu0
        %v962 = vpop.f32.mrb[0].mxu0
        %v963 = vadd.f32 %v827, %v962
        %v964 = vpop.f32.mrb[0].mxu0
        %965 = vmatprep.mubr.bf16.mxu0 0
        %966 = vmatmul.mubr.bf16.gmra.mrb[0].mxu0 %v805
        %v967 = vpop.f32.mrb[0].mxu0
        %v968 = vadd.f32 %v827, %v967
        %v969 = vpop.f32.mrb[0].mxu0
        %v970 = vpop.f32.mrb[0].mxu0
        %v971 = vadd.f32 %v827, %v970
        %v972 = vpop.f32.mrb[0].mxu0
        %973 = vdwg.mxu0
        %v974 = vmax.f32 %v912, 0.0
        %v975 = vmax.f32 %v915, 0.0
        %v976 = vmax.f32 %v920, 0.0
        %v977 = vmax.f32 %v923, 0.0
        %v978 = vmax.f32 %v928, 0.0
        %v979 = vmax.f32 %v931, 0.0
        %v980 = vmax.f32 %v936, 0.0
        %v981 = vmax.f32 %v939, 0.0
        %v982 = vmax.f32 %v944, 0.0
        %v983 = vmax.f32 %v947, 0.0
        %v984 = vmax.f32 %v952, 0.0
        %v985 = vmax.f32 %v955, 0.0
        %v986 = vmax.f32 %v960, 0.0
        %v987 = vmax.f32 %v963, 0.0
        %v988 = vmax.f32 %v968, 0.0
        %v989 = vmax.f32 %v971, 0.0
        %v990 = vld [vmem:[%s7] sm:$0xf]
        %v991 = vpack.c.bf16 %v975, %v974
        %v992 = vpack.c.bf16 %v977, %v976
        %v993 = vpack.c.bf16 %v979, %v978
        %v994 = vpack.c.bf16 %v981, %v980
        %v995 = vpack.c.bf16 %v983, %v982
        %v996 = vpack.c.bf16 %v985, %v984
        %v997 = vpack.c.bf16 %v987, %v986
        %v998 = vpack.c.bf16 %v989, %v988
        %v999 = vld [vmem:[%s8] sm:$0xff]
        %1001 = vset.pattern.permute.xlu0 0
        %1002 = vperm.xlu0 %1001, %v999
        %v1003 = vpop.permute.xlu0 %1002
        %1005 = vmatprep.subr.bf16.mxu0 0
        %1006 = vmatpush1.bf16.xpose.msra.mxu0 %v991
        %1007 = vmatprep.subr.bf16.mxu0 0
        %1008 = vmatpush1.bf16.xpose.msra.mxu0 %v992
        %1009 = vmatprep.subr.bf16.mxu0 0
        %1010 = vmatpush1.bf16.xpose.msra.mxu0 %v993
        %1011 = vmatprep.subr.bf16.mxu0 0
        %1012 = vmatpush1.bf16.xpose.msra.mxu0 %v994
        %1013 = vmatprep.subr.bf16.mxu0 0
        %1014 = vmatpush1.bf16.xpose.msra.mxu0 %v995
        %1015 = vmatprep.subr.bf16.mxu0 0
        %1016 = vmatpush1.bf16.xpose.msra.mxu0 %v996
        %1017 = vmatprep.subr.bf16.mxu0 0
        %1018 = vmatpush1.bf16.xpose.msra.mxu0 %v997
        %1019 = vmatprep.subr.bf16.mxu0 0
        %1020 = vmatpush1.bf16.xpose.msra.mxu0 %v998
        %1021 = vmatprep.subr.bf16.mxu0 0
        %1022 = vmatpush1.bf16.xpose.msra.mxu0 0
        %1023 = vmatprep.subr.bf16.mxu0 0
        %1024 = vmatpush1.bf16.xpose.msra.mxu0 0
        %1025 = vmatprep.subr.bf16.mxu0 0
        %1026 = vmatpush1.bf16.xpose.msra.mxu0 0
        %1027 = vmatprep.subr.bf16.mxu0 0
        %1028 = vmatpush1.bf16.xpose.msra.mxu0 0
        %1029 = vmatprep.subr.bf16.mxu0 0
        %1030 = vmatpush1.bf16.xpose.msra.mxu0 0
        %1031 = vmatprep.subr.bf16.mxu0 0
        %1032 = vmatpush1.bf16.xpose.msra.mxu0 0
        %1033 = vmatprep.subr.bf16.mxu0 0
        %1034 = vmatpush1.bf16.xpose.msra.mxu0 0
        %1035 = vmatprep.subr.bf16.mxu0 0
        %1036 = vmatpush1.bf16.xpose.msra.mxu0 0
        %1037 = vmatprep.mubr.bf16.mxu0 0
        %1038 = vmatmul.mubr.bf16.gmra.mrb[0].mxu0 %v990
        %v1039 = vpop.f32.mrb[0].mxu0
        %v1040 = vadd.f32 %v1003, %v1039
        %v1041 = vpop.f32.mrb[0].mxu0
        %v1042 = vpop.f32.mrb[0].mxu0
        %v1043 = vpop.f32.mrb[0].mxu0
        %1044 = vdwg.mxu0
        %1045 = vst [vmem:[%s342] sm:$0xff] %v1040
        %s1046 = sand.u32 %s230, 1
        %s1047 = scalar_lea.sflag [#allocation3], %s1046
        %s1048 = sand.u32 %s230, 1
        %s1049 = smul.addr %s1048, 8
        %s1050 = scalar_lea.vmem [#allocation2], %s1049
        // Predicated region
        $region57: #{tpu_custom_call.1} parent=55 // pred_check
          %p1051 = pneg %p240
        $region58: #{tpu_custom_call.1} parent=55 // pred_check_branch
          %1053 = sbr.rel (%p1051) target = $region60
        $region59: #{tpu_custom_call.1} parent=55 // pred_region
          %s1055 = ssub.s32 128, 128
          %1056 = vsyncadd %s1047, %s1055
          %s1057 = smul.addr %s23, 128
          %s1058 = scalar_lea.hbm %s9, %s1057
          %s1060 = sshll.u32 %s1050, 4
          %s1061 = int_to_ptr.vmem [resolvable:$true] %s1060
          %1063 = dma.vmem_to_hbm [thread:$0]  %s1061, 128, %s1058, %s1047
        $region60: #{tpu_custom_call.1} parent=55 // pred_fallthru
          _
      $region56: #{tpu_custom_call.1} parent=5 // pred_fallthru
        _
      %p1064 = scmp.le.s32.totalorder 2, %s18
      // Predicated region
      $region61: #{tpu_custom_call.1} parent=5 // pred_check
        %p1065 = pneg %p1064
      $region62: #{tpu_custom_call.1} parent=5 // pred_check_branch
        %1067 = sbr.rel (%p1065) target = $region64
      $region63: #{tpu_custom_call.1} parent=5 // pred_region
        %s1068 = ssub.s32 %s18, 2
        // Predicated region
        $region65: #{tpu_custom_call.1} parent=63 // pred_check
          %p1069 = pneg %p246
        $region66: #{tpu_custom_call.1} parent=63 // pred_check_branch
          %1071 = sbr.rel (%p1069) target = $region68
        $region67: #{tpu_custom_call.1} parent=63 // pred_region
          %s1072 = sand.u32 %s231, 1
          %s1073 = scalar_lea.sflag [#allocation3], %s1072
          %s1074 = sand.u32 %s231, 1
          %s1075 = smul.addr %s1074, 8
          %s1076 = scalar_lea.vmem [#allocation2], %s1075
          %1077 = dma.done %s1073, 128
        $region68: #{tpu_custom_call.1} parent=63 // pred_fallthru
          _
      $region64: #{tpu_custom_call.1} parent=5 // pred_fallthru
        _
    $region6: #{tpu_custom_call.1} parent=1 // loop_footer
      %s22 = sadd.s32 1, %s18
    $region7: #{tpu_custom_call.1} parent=1 // loop_footer_branch
      %17 = sbr.rel target = $region3
    $region8: #{tpu_custom_call.1} parent=1 // loop_exit
      _
    %1078 = vsyncpa [#allocation3], 1
    %s1079 = scalar_lea.sflag [#allocation3], 1
    %1080 = vsyncpa %s1079, 1

</llo_original>
